<compile_context>
chip_gen: v7x
topology: tpu7x:2x2x1
jax: 0.10.0
libtpu: 0.0.40
codegen_flags: <defaults>
</compile_context>

<pallas_src>
import functools

import jax
import jax.numpy as jnp
from jax.experimental import pallas as pl
from jax.experimental.pallas import tpu as pltpu

_LANE = 128


# ----------------------------- kernel bodies ------------------------------ #

def _h_sigmoid_kernel(x_ref, o_ref):
    x = x_ref[...].astype(jnp.float32)
    o_ref[...] = (jnp.clip(x + 3.0, 0.0, 6.0) * (1.0 / 6.0)).astype(o_ref.dtype)


def _h_swish_kernel(x_ref, o_ref):
    x = x_ref[...].astype(jnp.float32)
    gate = jnp.clip(x + 3.0, 0.0, 6.0) * (1.0 / 6.0)
    o_ref[...] = (x * gate).astype(o_ref.dtype)


def _se_scale_kernel(x_ref, g_ref, o_ref):
    # x_ref: (tr, tc)   g_ref: (tr, 1) float32 -- per-(b, c) gate broadcast over H*W.
    x = x_ref[...].astype(jnp.float32)
    g = g_ref[...]                                     # already float32
    gate = jnp.clip(g + 3.0, 0.0, 6.0) * (1.0 / 6.0)   # gate math stays in f32
    o_ref[...] = (x * gate).astype(o_ref.dtype)


# --------------------------- hardware / tiling ----------------------------- #

@functools.lru_cache(maxsize=None)
def _hw_plan():
    """Returns (block_target_bytes, vmem_limit_bytes, two_tensorcores)."""
    vmem = None
    try:
        vmem = getattr(pltpu.get_tpu_info(), "vmem_capacity_bytes", None)
    except Exception:
        vmem = None
    if vmem is None:
        return 2 << 20, 32 << 20, False        # conservative fallback
    if vmem <= (64 << 20):                     # v7x-class: 64 MiB VMEM, 2 TCs/chip
        return 4 << 20, 48 << 20, True
    return 8 << 20, 64 << 20, False            # v5e / v6e: 128 MiB VMEM, 1 TC/chip


def _sublane_multiple(dtype) -> int:
    bits = jnp.dtype(dtype).itemsize * 8
    if bits >= 32:
        return 8
    if bits == 16:
        return 16
    return 32


def _round_up(v: int, m: int) -> int:
    return -(-v // m) * m


def _choose_block_rows(n_rows: int, bytes_per_row: int, dtype,
                       target_bytes: int, two_cores: bool) -> int:
    """Row-block size: ~target_bytes per block, dtype-aware sublane multiple,
    full-dim block when the array fits, balanced even step count on 2-TC chips."""
    sub = _sublane_multiple(dtype)
    tr = max(sub, (target_bytes // max(1, bytes_per_row)) // sub * sub)
    if tr >= n_rows:
        tr = n_rows                        # whole array as one (full-dim) block
    if two_cores and n_rows > sub:
        steps = pl.cdiv(n_rows, tr)
        if steps % 2:
            steps += 1                     # even step count -> both TCs get work
        if steps <= 4:
            # few steps: make them (nearly) equal so the two TCs stay balanced
            tr = min(tr if tr > 0 else sub,
                     max(sub, _round_up(pl.cdiv(n_rows, steps), sub)))
            tr = min(tr, n_rows)
    return tr


def _pick_lane(n: int) -> int:
    for lane in (1024, 512, 256, _LANE):
        if n % lane == 0:
            return lane
    return _LANE


# --------------------------- elementwise wrapper --------------------------- #

def _elementwise_call(kernel, tail_fn, x: jax.Array, *, flops_per_elem: int) -> jax.Array:
    """Run a streaming elementwise kernel on an arbitrarily-shaped float array."""
    if not jnp.issubdtype(x.dtype, jnp.floating):
        raise TypeError(f"floating dtype required, got {x.dtype}")
    orig_shape, dtype = x.shape, x.dtype
    n = x.size
    if n == 0:
        return x
    itemsize = jnp.dtype(dtype).itemsize
    target_bytes, vmem_limit, two_cores = _hw_plan()

    xf = jnp.reshape(x, (-1,))            # copy-free for contiguous inputs
    rem = n % _LANE
    n_main = n - rem

    out_main = None
    if n_main:
        lane = _pick_lane(n_main)         # widen lane dim when divisible
        rows = n_main // lane
        x2d = jnp.reshape(xf[:n_main], (rows, lane))
        tr = _choose_block_rows(rows, lane * itemsize, dtype, target_bytes, two_cores)
        nbytes = n_main * itemsize
        cost = pl.CostEstimate(flops=flops_per_elem * n_main, transcendentals=0,
                               bytes_accessed=2 * nbytes)
        out2d = pl.pallas_call(
            kernel,
            out_shape=jax.ShapeDtypeStruct((rows, lane), dtype),
            grid_spec=pltpu.PrefetchScalarGridSpec(
                num_scalar_prefetch=0,
                grid=(pl.cdiv(rows, tr),),
                in_specs=[pl.BlockSpec((tr, lane), lambda i: (i, 0))],
                out_specs=pl.BlockSpec((tr, lane), lambda i: (i, 0)),
            ),
            compiler_params=pltpu.CompilerParams(
                dimension_semantics=("parallel",),
                vmem_limit_bytes=vmem_limit,
                allow_input_fusion=[True],
            ),
            cost_estimate=cost,
        )(x2d)
        out_main = jnp.reshape(out2d, (-1,))

    if rem:
        # Rare (<128 elements) tail: plain jnp, no full-tensor pad pass.
        out_tail = tail_fn(xf[n_main:])
        out_flat = out_tail if out_main is None else jnp.concatenate([out_main, out_tail])
    else:
        out_flat = out_main
    return jnp.reshape(out_flat, orig_shape)


def _h_sigmoid_ref(t):
    tf = t.astype(jnp.float32)
    return (jnp.clip(tf + 3.0, 0.0, 6.0) * (1.0 / 6.0)).astype(t.dtype)


def _h_swish_ref(t):
    tf = t.astype(jnp.float32)
    return (tf * (jnp.clip(tf + 3.0, 0.0, 6.0) * (1.0 / 6.0))).astype(t.dtype)


def hard_sigmoid(x: jax.Array) -> jax.Array:
    """h_sigmoid: relu6(x + 3) / 6."""
    return _elementwise_call(_h_sigmoid_kernel, _h_sigmoid_ref, x, flops_per_elem=4)


def hard_swish(x: jax.Array) -> jax.Array:
    """h_swish: x * relu6(x + 3) / 6 (fused in one kernel)."""
    return _elementwise_call(_h_swish_kernel, _h_swish_ref, x, flops_per_elem=5)


# ------------------------------ SE gate fusion ----------------------------- #

def se_scale(x: jax.Array, gate_pre: jax.Array) -> jax.Array:
    """SELayer gating: x * h_sigmoid(gate_pre); gate_pre is (B, C) (pre-sigmoid
    output of the SE fc stack), broadcast over H, W.  Fused in one kernel."""
    if not jnp.issubdtype(x.dtype, jnp.floating):
        raise TypeError(f"floating dtype required, got {x.dtype}")
    B, C, H, W = x.shape
    assert gate_pre.shape == (B, C), (gate_pre.shape, (B, C))

    hw = H * W
    bc = B * C
    itemsize = jnp.dtype(x.dtype).itemsize
    target_bytes, vmem_limit, two_cores = _hw_plan()
    sub = _sublane_multiple(x.dtype)

    x2d = jnp.reshape(x, (bc, hw))                       # copy-free
    hw_pad = _round_up(hw, _LANE)
    if hw_pad != hw:
        # Lane-dense layout: one pad copy, but converts masked vst.msk partial
        # stores and short strided per-row DMAs (hw = 49/196/784 in MobileNetV3
        # SE stages) into full-burst unmasked stores.
        x2d = jnp.pad(x2d, ((0, 0), (0, hw_pad - hw)))
    # Gate stays float32 so the hard-sigmoid matches the f32 PyTorch SE gate
    # even for bf16 activations; it's tiny ((B*C, 1)).
    g2d = jnp.reshape(gate_pre, (bc, 1)).astype(jnp.float32)

    # Column (lane) tiling: whole padded hw normally fits one block; split into
    # 128-multiples only for very large spatial sizes.
    tc = hw_pad
    if sub * hw_pad * itemsize > target_bytes:
        tc = max(_LANE, (target_bytes // (sub * itemsize)) // _LANE * _LANE)
    tr = _choose_block_rows(bc, tc * itemsize, x.dtype, target_bytes, two_cores)
    grid = (pl.cdiv(bc, tr), pl.cdiv(hw_pad, tc))

    cost = pl.CostEstimate(flops=4 * bc * hw_pad, transcendentals=0,
                           bytes_accessed=2 * bc * hw_pad * itemsize + bc * 4)

    out2d = pl.pallas_call(
        _se_scale_kernel,
        out_shape=jax.ShapeDtypeStruct((bc, hw_pad), x.dtype),
        grid_spec=pltpu.PrefetchScalarGridSpec(
            num_scalar_prefetch=0,
            grid=grid,
            in_specs=[pl.BlockSpec((tr, tc), lambda i, j: (i, j)),
                      pl.BlockSpec((tr, 1), lambda i, j: (i, 0))],
            out_specs=pl.BlockSpec((tr, tc), lambda i, j: (i, j)),
        ),
        compiler_params=pltpu.CompilerParams(
            dimension_semantics=("parallel", "parallel"),
            vmem_limit_bytes=vmem_limit,
            allow_input_fusion=[True, True],
        ),
        cost_estimate=cost,
    )(x2d, g2d)

    if hw_pad != hw:
        out2d = out2d[:, :hw]
    return jnp.reshape(out2d, (B, C, H, W))


# ----------------------------------- main ---------------------------------- #

if __name__ == "__main__":
    key = jax.random.PRNGKey(0)
    k1, k2, k3, k4, k5 = jax.random.split(key, 5)

    # NCHW activation, same convention as the PyTorch module receives.
    x = jax.random.normal(k1, (2, 4, 16, 16), dtype=jnp.float32) * 4.0

    # 1) h_sigmoid
    y = jax.block_until_ready(hard_sigmoid(x))
    y_ref = jnp.clip(x + 3.0, 0.0, 6.0) / 6.0
    assert y.shape == x.shape and y.dtype == x.dtype
    assert jnp.allclose(y, y_ref, atol=1e-5), "h_sigmoid mismatch"

    # 2) h_swish (fused x * h_sigmoid(x))
    z = jax.block_until_ready(hard_swish(x))
    z_ref = x * y_ref
    assert jnp.allclose(z, z_ref, atol=1e-5), "h_swish mismatch"

    # 3) SE gate (fused x * h_sigmoid(gate_pre), broadcast over H, W)
    gate_pre = jax.random.normal(k2, (2, 4), dtype=jnp.float32) * 4.0
    s = jax.block_until_ready(se_scale(x, gate_pre))
    s_ref = x * (jnp.clip(gate_pre + 3.0, 0.0, 6.0) / 6.0)[:, :, None, None]
    assert jnp.allclose(s, s_ref, atol=1e-5), "se_scale mismatch"

    # 4) SE gate with hw not a multiple of 128 (MobileNetV3-style 7x7 stage):
    #    exercises the lane-dense padded path.
    x7 = jax.random.normal(k3, (2, 8, 7, 7), dtype=jnp.float32) * 4.0
    g7 = jax.random.normal(k3, (2, 8), dtype=jnp.float32) * 4.0
    s7 = jax.block_until_ready(se_scale(x7, g7))
    s7_ref = x7 * (jnp.clip(g7 + 3.0, 0.0, 6.0) / 6.0)[:, :, None, None]
    assert jnp.allclose(s7, s7_ref, atol=1e-5), "se_scale (padded hw) mismatch"

    # 5) Partial-final-block path and odd-tail path.
    x_odd = jax.random.normal(k4, (1, 3, 40, 128), dtype=jnp.float32) * 4.0
    w = jax.block_until_ready(hard_sigmoid(x_odd))
    w_ref = jnp.clip(x_odd + 3.0, 0.0, 6.0) / 6.0
    assert jnp.allclose(w, w_ref, atol=1e-5), "h_sigmoid (partial block) mismatch"

    x_tail = jax.random.normal(k4, (2, 3, 7, 5), dtype=jnp.float32) * 4.0
    v = jax.block_until_ready(hard_swish(x_tail))
    v_ref = x_tail * (jnp.clip(x_tail + 3.0, 0.0, 6.0) / 6.0)
    assert jnp.allclose(v, v_ref, atol=1e-5), "h_swish (tail path) mismatch"

    # 6) bf16 path (dtype-aware sublane tiling; gate math stays in f32).
    xb = (jax.random.normal(k5, (2, 8, 32, 32), dtype=jnp.float32) * 4.0).astype(jnp.bfloat16)
    hb = jax.block_until_ready(hard_swish(xb))
    xbf = xb.astype(jnp.float32)
    hb_ref = (xbf * (jnp.clip(xbf + 3.0, 0.0, 6.0) / 6.0)).astype(jnp.bfloat16)
    assert jnp.allclose(hb.astype(jnp.float32), hb_ref.astype(jnp.float32),
                        atol=2e-2, rtol=2e-2), "h_swish bf16 mismatch"

    gb = jax.random.normal(k5, (2, 8), dtype=jnp.float32) * 4.0
    sb = jax.block_until_ready(se_scale(xb, gb))
    sb_ref = (xbf * (jnp.clip(gb + 3.0, 0.0, 6.0) / 6.0)[:, :, None, None]).astype(jnp.bfloat16)
    assert jnp.allclose(sb.astype(jnp.float32), sb_ref.astype(jnp.float32),
                        atol=2e-2, rtol=2e-2), "se_scale bf16 mismatch"

    print("KERNEL_OK")
</pallas_src>

<mosaic_0001>
module attributes {stable_mosaic.version = 11 : i64} {
  func.func @_h_sigmoid_kernel(%arg0: i32, %arg1: memref<2x1024xf32, #tpu.memory_space<vmem>>, %arg2: memref<2x1024xf32, #tpu.memory_space<vmem>>) attributes {dimension_semantics = [#tpu.dimension_semantics<parallel>], iteration_bounds = array<i64: 1>, scalar_prefetch = 0 : i64, scratch_operands = 0 : i64, tpu.core_type = #tpu.core_type<tc>, window_params = [{transform_indices = @transform_0, window_bounds = array<i64: 2, 1024>}, {transform_indices = @transform_1, window_bounds = array<i64: 2, 1024>}]} {
    %c0 = arith.constant 0 : index
    %c0_0 = arith.constant 0 : index
    %0 = vector.load %arg1[%c0, %c0_0] : memref<2x1024xf32, #tpu.memory_space<vmem>>, vector<2x1024xf32>
    %cst = arith.constant 3.000000e+00 : f32
    %1 = vector.broadcast %cst : f32 to vector<2x1024xf32>
    %2 = arith.addf %0, %1 : vector<2x1024xf32>
    %cst_1 = arith.constant 0.000000e+00 : f32
    %cst_2 = arith.constant 6.000000e+00 : f32
    %3 = vector.broadcast %cst_1 : f32 to vector<2x1024xf32>
    %4 = arith.maximumf %3, %2 : vector<2x1024xf32>
    %5 = vector.broadcast %cst_2 : f32 to vector<2x1024xf32>
    %6 = arith.minimumf %5, %4 : vector<2x1024xf32>
    %cst_3 = arith.constant 0.166666672 : f32
    %7 = vector.broadcast %cst_3 : f32 to vector<2x1024xf32>
    %8 = arith.mulf %6, %7 : vector<2x1024xf32>
    %c0_4 = arith.constant 0 : index
    %c0_5 = arith.constant 0 : index
    %9 = vector.load %arg2[%c0_4, %c0_5] : memref<2x1024xf32, #tpu.memory_space<vmem>>, vector<2x1024xf32>
    tpu.vector_store %arg2[%c0_4, %c0_5], %8 {strides = array<i32>} : memref<2x1024xf32, #tpu.memory_space<vmem>>, vector<2x1024xf32>,
    return
  }
  func.func @transform_0(%arg0: i32) -> (i32, i32) {
    %c0_i32 = arith.constant 0 : i32
    %c0_i32_0 = arith.constant 0 : i32
    return %arg0, %c0_i32 : i32, i32
  }
  func.func @transform_1(%arg0: i32) -> (i32, i32) {
    %c0_i32 = arith.constant 0 : i32
    %c0_i32_0 = arith.constant 0 : i32
    return %arg0, %c0_i32 : i32, i32
  }
}

</mosaic_0001>

<llo_original>
// kernel: tpu_custom_call.1
$region0: #{tpu_custom_call.1}
  #allocation0 [shape = 'u32[]', space=smem, size = 0x4, offset = 0x4, fixed_abs, tag = 'smem constant byte address 0x4 - core index']
  #allocation1 [shape = 'u32[144,128]{1,0:T(1,128)}', space=vmem, size = 0x12000, scoped, tag = 'internal scratch']
  %s0 = inlined_call_operand.hbm [shape: f32[2,1024], index: 0, kind: input, shape index: {}]
  %s1 = inlined_call_operand.hbm [shape: f32[2,1024], index: 1, kind: output, shape index: {}]
  %s2 = sld [smem:[#allocation0]]
  $region18: #{tpu_custom_call.1} parent=0
    _
  %s4 = ssub.s32 1, %s2
  %s5 = scalar_select 0, %s4, %s2
  $region1: #{tpu_custom_call.1} parent=0
    #allocation2 [shape = 'u8[8192]{0}', space=vmem, size = 0x2000, scoped, tag = 'input window, operand 0, single buffered']
    #allocation3 [shape = 's32[1]{0}', space=sflag, size = 0x4, scoped, tag = 'scoped memory for tpu_custom_call.1']
    #allocation4 [shape = 's32[1]{0}', space=sflag, size = 0x4, scoped, tag = 'scoped memory for tpu_custom_call.1']
    #allocation5 [shape = 'u8[8192]{0}', space=vmem, size = 0x2000, scoped, tag = 'output window, operand 0, single buffered']
    %6 = vsyncpa [#allocation3], 0
    %7 = vsyncpa [#allocation4], 0
    // Predicated region
    $region2: #{tpu_custom_call.1} parent=1 // pred_check
      _
    $region3: #{tpu_custom_call.1} parent=1 // pred_check_branch
      %9 = sbr.rel (0) target = $region5
    $region4: #{tpu_custom_call.1} parent=1 // pred_region
      %s11 = ssub.s32 256, 256
      %12 = vsyncadd [#allocation3], %s11
      %s14 = sshll.u32 [#allocation2], 4
      %s15 = int_to_ptr.vmem [resolvable:$true] %s14
      %17 = dma.hbm_to_vmem [thread:$0]  %s0, 256, %s15, [#allocation3]
    $region5: #{tpu_custom_call.1} parent=1 // pred_fallthru
      _
    // Predicated region
    $region6: #{tpu_custom_call.1} parent=1 // pred_check
      _
    $region7: #{tpu_custom_call.1} parent=1 // pred_check_branch
      %19 = sbr.rel (0) target = $region9
    $region8: #{tpu_custom_call.1} parent=1 // pred_region
      %20 = dma.done [#allocation3], 256
    $region9: #{tpu_custom_call.1} parent=1 // pred_fallthru
      _
    %v21 = vld [vmem:[#allocation2] sm:$0xff]
    %v22 = vld [vmem:[#allocation2 + $0x8] sm:$0xff]
    %v23 = vadd.f32 %v21, 3.0
    %v24 = vadd.f32 %v22, 3.0
    %v25 = vmax.f32 %v23, 0.0
    %v26 = vmax.f32 %v24, 0.0
    %v27 = vmin.f32 %v25, 6.0
    %v28 = vmin.f32 %v26, 6.0
    %v29 = vmul.f32 %v27, 0.16666667
    %v30 = vmul.f32 %v28, 0.16666667
    %31 = vst [vmem:[#allocation5] sm:$0xff] %v29
    %32 = vst [vmem:[#allocation5 + $0x8] sm:$0xff] %v30
    // Predicated region
    $region10: #{tpu_custom_call.1} parent=1 // pred_check
      _
    $region11: #{tpu_custom_call.1} parent=1 // pred_check_branch
      %34 = sbr.rel (0) target = $region13
    $region12: #{tpu_custom_call.1} parent=1 // pred_region
      %s36 = ssub.s32 256, 256
      %37 = vsyncadd [#allocation4], %s36
      %s39 = sshll.u32 [#allocation5], 4
      %s40 = int_to_ptr.vmem [resolvable:$true] %s39
      %42 = dma.vmem_to_hbm [thread:$0]  %s40, 256, %s1, [#allocation4]
    $region13: #{tpu_custom_call.1} parent=1 // pred_fallthru
      _
    // Predicated region
    $region14: #{tpu_custom_call.1} parent=1 // pred_check
      _
    $region15: #{tpu_custom_call.1} parent=1 // pred_check_branch
      %44 = sbr.rel (0) target = $region17
    $region16: #{tpu_custom_call.1} parent=1 // pred_region
      %45 = dma.done [#allocation4], 256
    $region17: #{tpu_custom_call.1} parent=1 // pred_fallthru
      _
    %46 = vsyncpa [#allocation3], 1
    %47 = vsyncpa [#allocation4], 1

</llo_original>
